<compile_context>
chip_gen: v7x
topology: tpu7x:2x2x1
jax: 0.10.0
libtpu: 0.0.40
codegen_flags: <defaults>
</compile_context>

<pallas_src>
import numpy as np
import jax
import jax.numpy as jnp
from jax.experimental import pallas as pl
from jax.experimental.pallas import tpu as pltpu

DROPOUT_P = 0.2
_KEEP_THRESHOLD_U32 = np.uint32(int(DROPOUT_P * (1 << 32)))  # bits >= this -> keep
_INV_KEEP = 1.0 / (1.0 - DROPOUT_P)


def _round_up(x, m):
    return (x + m - 1) // m * m


def mlp_kernel(x_ref, bits_ref, w1_ref, b1_ref, w2_ref, b2_ref, o_ref):
    # ---- linear1: bf16 MXU operands, f32 accumulate; bias + relu on VPU in f32 ----
    h = jnp.dot(x_ref[...].astype(jnp.bfloat16), w1_ref[...],
                preferred_element_type=jnp.float32)
    h = jnp.maximum(h + b1_ref[...], 0.0)

    # ---- dropout (training-mode semantics, matching the torch module's forward) ----
    # Keep-decision directly on raw uint32 bits; scale folded into the select.
    keep = bits_ref[...] >= _KEEP_THRESHOLD_U32
    h = jnp.where(keep, h * _INV_KEEP, 0.0)

    # ---- linear2 ----
    o_ref[...] = (jnp.dot(h.astype(jnp.bfloat16), w2_ref[...],
                          preferred_element_type=jnp.float32)
                  + b2_ref[...]).astype(o_ref.dtype)


def mlp_forward(x, w1, b1, w2, b2, *, rng_key, tile_b=512):
    """x: (B, d); w1: (d, H); b1: (H,); w2: (H, K); b2: (K,); rng_key: dropout key."""
    x = x.astype(jnp.float32)  # matches x.float() in the torch module
    B, d = x.shape
    H = w1.shape[1]
    K = w2.shape[1]

    # Lane-dense output: pad K up to a multiple of 128 (zero-padded weight columns).
    Kp = _round_up(max(K, 128), 128)
    if Kp != K:
        w2 = jnp.pad(w2, ((0, 0), (0, Kp - K)))
        b2 = jnp.pad(b2, (0, Kp - K))

    # Batch tile: multiple of 8 (f32 sublane), capped at `tile_b`; pad B to tile.
    tb = _round_up(min(tile_b, _round_up(B, 8)), 8)
    Bp = _round_up(B, tb)
    if Bp != B:
        x = jnp.pad(x, ((0, Bp - B), (0, 0)))

    # Dropout random bits (uint32), one per hidden activation. Generated with the
    # standard JAX PRNG so the kernel runs on TPU *and* under CPU interpret mode.
    bits = jax.random.bits(rng_key, (Bp, H), jnp.uint32)

    # bf16 weights: halves resident-weight VMEM and HBM DMA; accumulation stays f32.
    w1b = w1.astype(jnp.bfloat16)
    w2b = w2.astype(jnp.bfloat16)
    b1_2d = b1.reshape(1, H).astype(jnp.float32)
    b2_2d = b2.reshape(1, Kp).astype(jnp.float32)

    grid = (Bp // tb,)

    # VMEM budget: resident weights + double-buffered activation tiles (+ margin),
    # clamped so the same tiling survives v7x's 64 MiB VMEM.
    weight_bytes = (d * H + H * Kp) * 2 + (H + Kp) * 4
    tile_bytes = tb * (d * 4 + H * 4 + Kp * 4)
    vmem_limit = int(1.5 * (weight_bytes + 2 * tile_bytes)) + (2 << 20)
    vmem_limit = max(16 << 20, min(vmem_limit, 64 << 20))

    cost = pl.CostEstimate(
        flops=2 * Bp * (d * H + H * Kp),
        transcendentals=0,
        bytes_accessed=Bp * d * 4 + Bp * H * 4 + weight_bytes + Bp * Kp * 4,
    )

    out = pl.pallas_call(
        mlp_kernel,
        out_shape=jax.ShapeDtypeStruct((Bp, Kp), jnp.float32),
        grid=grid,
        in_specs=[
            pl.BlockSpec((tb, d), lambda i: (i, 0)),    # x tile (double-buffered)
            pl.BlockSpec((tb, H), lambda i: (i, 0)),    # dropout bits tile
            pl.BlockSpec((d, H), lambda i: (0, 0)),     # w1: VMEM-resident
            pl.BlockSpec((1, H), lambda i: (0, 0)),     # b1
            pl.BlockSpec((H, Kp), lambda i: (0, 0)),    # w2: VMEM-resident
            pl.BlockSpec((1, Kp), lambda i: (0, 0)),    # b2
        ],
        out_specs=pl.BlockSpec((tb, Kp), lambda i: (i, 0)),
        compiler_params=pltpu.CompilerParams(
            dimension_semantics=("parallel",),
            vmem_limit_bytes=vmem_limit,
        ),
        cost_estimate=cost,
    )(x, bits, w1b, b1_2d, w2b, b2_2d)

    # TODO(synk): if H/K grow large enough that resident weights blow VMEM, add a
    # reduction grid axis over H with a VMEM accumulator (pl.when init/finalize).
    return out[:B, :K]


def init_params(key, d, hidden_d, k):
    """Deterministic init mimicking nn.Linear's default (uniform +/- 1/sqrt(fan_in))."""
    k1, k2, k3, k4 = jax.random.split(key, 4)
    lim1 = 1.0 / jnp.sqrt(d)
    lim2 = 1.0 / jnp.sqrt(hidden_d)
    w1 = jax.random.uniform(k1, (d, hidden_d), jnp.float32, -lim1, lim1)
    b1 = jax.random.uniform(k2, (hidden_d,), jnp.float32, -lim1, lim1)
    w2 = jax.random.uniform(k3, (hidden_d, k), jnp.float32, -lim2, lim2)
    b2 = jax.random.uniform(k4, (k,), jnp.float32, -lim2, lim2)
    return w1, b1, w2, b2


if __name__ == "__main__":
    # Small shapes implied by the module: d features -> hidden_d -> k classes.
    batch, d, hidden_d, k = 8, 32, 64, 16

    key = jax.random.PRNGKey(0)
    kx, kp, kdrop = jax.random.split(key, 3)
    x = jax.random.normal(kx, (batch, d), dtype=jnp.float32)
    w1, b1, w2, b2 = init_params(kp, d, hidden_d, k)

    out = mlp_forward(x, w1, b1, w2, b2, rng_key=kdrop)
    jax.block_until_ready(out)
    assert out.shape == (batch, k)
    assert bool(jnp.all(jnp.isfinite(out)))
    print("KERNEL_OK")
</pallas_src>

<mosaic_0001>
module attributes {stable_mosaic.version = 11 : i64} {
  func.func @mlp_kernel(%arg0: i32, %arg1: memref<8x32xf32, #tpu.memory_space<vmem>>, %arg2: memref<8x64xi32, #tpu.memory_space<vmem>>, %arg3: memref<32x64xbf16, #tpu.memory_space<vmem>>, %arg4: memref<1x64xf32, #tpu.memory_space<vmem>>, %arg5: memref<64x128xbf16, #tpu.memory_space<vmem>>, %arg6: memref<1x128xf32, #tpu.memory_space<vmem>>, %arg7: memref<8x128xf32, #tpu.memory_space<vmem>>) attributes {dimension_semantics = [#tpu.dimension_semantics<parallel>], iteration_bounds = array<i64: 1>, scalar_prefetch = 0 : i64, scratch_operands = 0 : i64, tpu.core_type = #tpu.core_type<tc>, window_params = [{transform_indices = @transform_0, window_bounds = array<i64: 8, 32>}, {transform_indices = @transform_1, window_bounds = array<i64: 8, 64>}, {pipeline_mode = #tpu.pipeline_mode<synchronous>, transform_indices = @transform_2, window_bounds = array<i64: 32, 64>}, {pipeline_mode = #tpu.pipeline_mode<synchronous>, transform_indices = @transform_3, window_bounds = array<i64: 1, 64>}, {pipeline_mode = #tpu.pipeline_mode<synchronous>, transform_indices = @transform_4, window_bounds = array<i64: 64, 128>}, {pipeline_mode = #tpu.pipeline_mode<synchronous>, transform_indices = @transform_5, window_bounds = array<i64: 1, 128>}, {transform_indices = @transform_6, window_bounds = array<i64: 8, 128>}]} {
    %c0 = arith.constant 0 : index
    %c0_0 = arith.constant 0 : index
    %0 = vector.load %arg1[%c0, %c0_0] : memref<8x32xf32, #tpu.memory_space<vmem>>, vector<8x32xf32>
    %1 = arith.truncf %0 : vector<8x32xf32> to vector<8x32xbf16>
    %c0_1 = arith.constant 0 : index
    %c0_2 = arith.constant 0 : index
    %2 = vector.load %arg3[%c0_1, %c0_2] : memref<32x64xbf16, #tpu.memory_space<vmem>>, vector<32x64xbf16>
    %cst = arith.constant dense<0.000000e+00> : vector<8x64xf32>
    %3 = tpu.matmul %1, %2, %cst {dimension_numbers = #tpu.dot_dimension_numbers<[1], [0], [0], [1], [0, 0, 1, 1], [], []>} : vector<8x32xbf16>, vector<32x64xbf16>, vector<8x64xf32> -> vector<8x64xf32>
    %c0_3 = arith.constant 0 : index
    %c0_4 = arith.constant 0 : index
    %4 = vector.load %arg4[%c0_3, %c0_4] : memref<1x64xf32, #tpu.memory_space<vmem>>, vector<1x64xf32>
    %5 = vector.broadcast %4 : vector<1x64xf32> to vector<8x64xf32>
    %6 = arith.addf %3, %5 : vector<8x64xf32>
    %cst_5 = arith.constant 0.000000e+00 : f32
    %7 = vector.broadcast %cst_5 : f32 to vector<8x64xf32>
    %8 = arith.maximumf %6, %7 : vector<8x64xf32>
    %c0_6 = arith.constant 0 : index
    %c0_7 = arith.constant 0 : index
    %9 = vector.load %arg2[%c0_6, %c0_7] : memref<8x64xi32, #tpu.memory_space<vmem>>, vector<8x64xi32>
    %c858993459_i32 = arith.constant 858993459 : i32
    %10 = vector.broadcast %c858993459_i32 : i32 to vector<8x64xi32>
    %11 = arith.cmpi uge, %9, %10 : vector<8x64xi32>
    %cst_8 = arith.constant 1.250000e+00 : f32
    %12 = vector.broadcast %cst_8 : f32 to vector<8x64xf32>
    %13 = arith.mulf %8, %12 : vector<8x64xf32>
    %cst_9 = arith.constant 0.000000e+00 : f32
    %14 = vector.broadcast %cst_9 : f32 to vector<8x64xf32>
    %15 = arith.select %11, %13, %14 : vector<8x64xi1>, vector<8x64xf32>
    %16 = arith.truncf %15 : vector<8x64xf32> to vector<8x64xbf16>
    %c0_10 = arith.constant 0 : index
    %c0_11 = arith.constant 0 : index
    %17 = vector.load %arg5[%c0_10, %c0_11] : memref<64x128xbf16, #tpu.memory_space<vmem>>, vector<64x128xbf16>
    %cst_12 = arith.constant dense<0.000000e+00> : vector<8x128xf32>
    %18 = tpu.matmul %16, %17, %cst_12 {dimension_numbers = #tpu.dot_dimension_numbers<[1], [0], [0], [1], [0, 0, 1, 1], [], []>} : vector<8x64xbf16>, vector<64x128xbf16>, vector<8x128xf32> -> vector<8x128xf32>
    %c0_13 = arith.constant 0 : index
    %c0_14 = arith.constant 0 : index
    %19 = vector.load %arg6[%c0_13, %c0_14] : memref<1x128xf32, #tpu.memory_space<vmem>>, vector<1x128xf32>
    %20 = vector.broadcast %19 : vector<1x128xf32> to vector<8x128xf32>
    %21 = arith.addf %18, %20 : vector<8x128xf32>
    %c0_15 = arith.constant 0 : index
    %c0_16 = arith.constant 0 : index
    %22 = vector.load %arg7[%c0_15, %c0_16] : memref<8x128xf32, #tpu.memory_space<vmem>>, vector<8x128xf32>
    tpu.vector_store %arg7[%c0_15, %c0_16], %21 {strides = array<i32>} : memref<8x128xf32, #tpu.memory_space<vmem>>, vector<8x128xf32>,
    return
  }
  func.func @transform_0(%arg0: i32) -> (i32, i32) {
    %c0_i32 = arith.constant 0 : i32
    %c0_i32_0 = arith.constant 0 : i32
    return %arg0, %c0_i32 : i32, i32
  }
  func.func @transform_1(%arg0: i32) -> (i32, i32) {
    %c0_i32 = arith.constant 0 : i32
    %c0_i32_0 = arith.constant 0 : i32
    return %arg0, %c0_i32 : i32, i32
  }
  func.func @transform_2(%arg0: i32) -> (i32, i32) {
    %c0_i32 = arith.constant 0 : i32
    %c0_i32_0 = arith.constant 0 : i32
    %c0_i32_1 = arith.constant 0 : i32
    return %c0_i32, %c0_i32_0 : i32, i32
  }
  func.func @transform_3(%arg0: i32) -> (i32, i32) {
    %c0_i32 = arith.constant 0 : i32
    %c0_i32_0 = arith.constant 0 : i32
    %c0_i32_1 = arith.constant 0 : i32
    return %c0_i32, %c0_i32_0 : i32, i32
  }
  func.func @transform_4(%arg0: i32) -> (i32, i32) {
    %c0_i32 = arith.constant 0 : i32
    %c0_i32_0 = arith.constant 0 : i32
    %c0_i32_1 = arith.constant 0 : i32
    return %c0_i32, %c0_i32_0 : i32, i32
  }
  func.func @transform_5(%arg0: i32) -> (i32, i32) {
    %c0_i32 = arith.constant 0 : i32
    %c0_i32_0 = arith.constant 0 : i32
    %c0_i32_1 = arith.constant 0 : i32
    return %c0_i32, %c0_i32_0 : i32, i32
  }
  func.func @transform_6(%arg0: i32) -> (i32, i32) {
    %c0_i32 = arith.constant 0 : i32
    %c0_i32_0 = arith.constant 0 : i32
    return %arg0, %c0_i32 : i32, i32
  }
}

</mosaic_0001>

<llo_original>
// kernel: tpu_custom_call.1
$region0: #{tpu_custom_call.1}
  #allocation0 [shape = 'u32[]', space=smem, size = 0x4, offset = 0x4, fixed_abs, tag = 'smem constant byte address 0x4 - core index']
  #allocation1 [shape = 'u32[144,128]{1,0:T(1,128)}', space=vmem, size = 0x12000, scoped, tag = 'internal scratch']
  %s0 = inlined_call_operand.hbm [shape: f32[8,32], index: 0, kind: input, shape index: {}]
  %s1 = inlined_call_operand.hbm [shape: u32[8,64], index: 1, kind: input, shape index: {}]
  %s2 = inlined_call_operand.hbm [shape: bf16[32,64], index: 2, kind: input, shape index: {}]
  %s3 = inlined_call_operand.vmem [shape: f32[1,64], index: 3, kind: input, shape index: {}]
  %s4 = inlined_call_operand.hbm [shape: bf16[64,128], index: 4, kind: input, shape index: {}]
  %s5 = inlined_call_operand.vmem [shape: f32[1,128], index: 5, kind: input, shape index: {}]
  %s6 = inlined_call_operand.hbm [shape: f32[8,128], index: 6, kind: output, shape index: {}]
  %s7 = sld [smem:[#allocation0]]
  $region50: #{tpu_custom_call.1} parent=0
    _
  %s9 = ssub.s32 1, %s7
  %s10 = scalar_select 0, %s9, %s7
  $region1: #{tpu_custom_call.1} parent=0
    #allocation2 [shape = 'u8[4096]{0}', space=vmem, size = 0x1000, scoped, tag = 'input window, operand 0, single buffered']
    #allocation3 [shape = 's32[1]{0}', space=sflag, size = 0x4, scoped, tag = 'scoped memory for tpu_custom_call.1']
    #allocation4 [shape = 's32[1]{0}', space=sflag, size = 0x4, scoped, tag = 'scoped memory for tpu_custom_call.1']
    #allocation5 [shape = 'u8[4096]{0}', space=vmem, size = 0x1000, scoped, tag = 'input window, operand 1, single buffered']
    #allocation6 [shape = 's32[1]{0}', space=sflag, size = 0x4, scoped, tag = 'scoped memory for tpu_custom_call.1']
    #allocation7 [shape = 'u8[8192]{0}', space=vmem, size = 0x2000, scoped, tag = 'input window, operand 2, single buffered']
    #allocation8 [shape = 'u8[16384]{0}', space=vmem, size = 0x4000, scoped, tag = 'input window, operand 4, single buffered']
    #allocation9 [shape = 's32[1]{0}', space=sflag, size = 0x4, scoped, tag = 'scoped memory for tpu_custom_call.1']
    #allocation10 [shape = 'u8[4096]{0}', space=vmem, size = 0x1000, scoped, tag = 'output window, operand 0, single buffered']
    %11 = vsyncpa [#allocation3], 0
    %12 = vsyncpa [#allocation6], 0
    %13 = vsyncpa [#allocation9], 0
    %14 = vsyncpa [#allocation4], 0
    // Predicated region
    $region2: #{tpu_custom_call.1} parent=1 // pred_check
      _
    $region3: #{tpu_custom_call.1} parent=1 // pred_check_branch
      %16 = sbr.rel (0) target = $region5
    $region4: #{tpu_custom_call.1} parent=1 // pred_region
      %s18 = ssub.s32 128, 128
      %19 = vsyncadd [#allocation3], %s18
      %s21 = sshll.u32 [#allocation2], 4
      %s22 = int_to_ptr.vmem [resolvable:$true] %s21
      %24 = dma.hbm_to_vmem [thread:$0]  %s0, 128, %s22, [#allocation3]
    $region5: #{tpu_custom_call.1} parent=1 // pred_fallthru
      _
    // Predicated region
    $region6: #{tpu_custom_call.1} parent=1 // pred_check
      _
    $region7: #{tpu_custom_call.1} parent=1 // pred_check_branch
      %26 = sbr.rel (0) target = $region9
    $region8: #{tpu_custom_call.1} parent=1 // pred_region
      %s28 = ssub.s32 128, 128
      %29 = vsyncadd [#allocation6], %s28
      %s31 = sshll.u32 [#allocation5], 4
      %s32 = int_to_ptr.vmem [resolvable:$true] %s31
      %34 = dma.hbm_to_vmem [thread:$0]  %s1, 128, %s32, [#allocation6]
    $region9: #{tpu_custom_call.1} parent=1 // pred_fallthru
      _
    // Predicated region
    $region10: #{tpu_custom_call.1} parent=1 // pred_check
      _
    $region11: #{tpu_custom_call.1} parent=1 // pred_check_branch
      %36 = sbr.rel (0) target = $region13
    $region12: #{tpu_custom_call.1} parent=1 // pred_region
      %s38 = ssub.s32 256, 256
      %39 = vsyncadd [#allocation6], %s38
      %s40 = sshll.u32 [#allocation7], 4
      %s41 = int_to_ptr.vmem [resolvable:$true] %s40
      %46 = dma.hbm_to_vmem [thread:$0]  %s2, 256, %s41, [#allocation6], 64, 64, 4
    $region13: #{tpu_custom_call.1} parent=1 // pred_fallthru
      _
    // Predicated region
    $region14: #{tpu_custom_call.1} parent=1 // pred_check
      _
    $region15: #{tpu_custom_call.1} parent=1 // pred_check_branch
      %48 = sbr.rel (0) target = $region17
    $region16: #{tpu_custom_call.1} parent=1 // pred_region
      _
    $region17: #{tpu_custom_call.1} parent=1 // pred_fallthru
      _
    // Predicated region
    $region18: #{tpu_custom_call.1} parent=1 // pred_check
      _
    $region19: #{tpu_custom_call.1} parent=1 // pred_check_branch
      %50 = sbr.rel (0) target = $region21
    $region20: #{tpu_custom_call.1} parent=1 // pred_region
      %s52 = ssub.s32 512, 512
      %53 = vsyncadd [#allocation9], %s52
      %s54 = sshll.u32 [#allocation8], 4
      %s55 = int_to_ptr.vmem [resolvable:$true] %s54
      %60 = dma.hbm_to_vmem [thread:$0]  %s4, 512, %s55, [#allocation9], 64, 64, 4
    $region21: #{tpu_custom_call.1} parent=1 // pred_fallthru
      _
    // Predicated region
    $region22: #{tpu_custom_call.1} parent=1 // pred_check
      _
    $region23: #{tpu_custom_call.1} parent=1 // pred_check_branch
      %62 = sbr.rel (0) target = $region25
    $region24: #{tpu_custom_call.1} parent=1 // pred_region
      _
    $region25: #{tpu_custom_call.1} parent=1 // pred_fallthru
      _
    // Predicated region
    $region26: #{tpu_custom_call.1} parent=1 // pred_check
      _
    $region27: #{tpu_custom_call.1} parent=1 // pred_check_branch
      %64 = sbr.rel (0) target = $region29
    $region28: #{tpu_custom_call.1} parent=1 // pred_region
      %65 = dma.done [#allocation3], 128
    $region29: #{tpu_custom_call.1} parent=1 // pred_fallthru
      _
    // Predicated region
    $region30: #{tpu_custom_call.1} parent=1 // pred_check
      _
    $region31: #{tpu_custom_call.1} parent=1 // pred_check_branch
      %67 = sbr.rel (0) target = $region33
    $region32: #{tpu_custom_call.1} parent=1 // pred_region
      %68 = dma.done [#allocation6], 128
    $region33: #{tpu_custom_call.1} parent=1 // pred_fallthru
      _
    // Predicated region
    $region34: #{tpu_custom_call.1} parent=1 // pred_check
      _
    $region35: #{tpu_custom_call.1} parent=1 // pred_check_branch
      %70 = sbr.rel (0) target = $region37
    $region36: #{tpu_custom_call.1} parent=1 // pred_region
      %71 = dma.done [#allocation6], 256
    $region37: #{tpu_custom_call.1} parent=1 // pred_fallthru
      _
    // Predicated region
    $region38: #{tpu_custom_call.1} parent=1 // pred_check
      _
    $region39: #{tpu_custom_call.1} parent=1 // pred_check_branch
      %73 = sbr.rel (0) target = $region41
    $region40: #{tpu_custom_call.1} parent=1 // pred_region
      %74 = dma.done [#allocation9], 512
    $region41: #{tpu_custom_call.1} parent=1 // pred_fallthru
      _
    %v76 = vld [vmem:[#allocation2] sm:$0xff]
    %v77 = vpack.c.bf16 %v76, %v76
    %v78 = vld [vmem:[#allocation7] sm:$0xf]
    %v79 = vld [vmem:[#allocation7 + $0x4] sm:$0xf]
    %v80 = vld [vmem:[#allocation7 + $0x8] sm:$0xf]
    %v81 = vld [vmem:[#allocation7 + $0xc] sm:$0xf]
    %v82 = vld [vmem:[%s3] sm:$0x1]
    %v84 = vlaneseq
    %v85 = vshrl.u32 %v84, 7
    %v86 = vsub.s32 0, %v85
    %v87 = vrot.slane %v82, %v86
    %v93 = vunpack.c.l.b16 %v78
    %v94 = vunpack.c.l.b16 %v79
    %v95 = vunpack.c.l.b16 %v80
    %v96 = vunpack.c.l.b16 %v81
    %v97 = vpack.c.b16 %v94, %v93
    %v98 = vpack.c.b16 %v96, %v95
    %vm101 = vcmask 261120
    %v103 = vsel %vm101, %v77, 0
    %105 = vmatprep.subr.bf16.mxu0 0
    %106 = vmatpush1.bf16.msra.mxu0 %v97
    %107 = vmatprep.subr.bf16.mxu0 0
    %108 = vmatpush1.bf16.msra.mxu0 %v98
    %109 = vmatprep.subr.bf16.mxu0 0
    %110 = vmatpush1.bf16.msra.mxu0 0
    %111 = vmatprep.subr.bf16.mxu0 0
    %112 = vmatpush1.bf16.msra.mxu0 0
    %113 = vmatprep.subr.bf16.mxu0 0
    %114 = vmatpush1.bf16.msra.mxu0 0
    %115 = vmatprep.subr.bf16.mxu0 0
    %116 = vmatpush1.bf16.msra.mxu0 0
    %117 = vmatprep.subr.bf16.mxu0 0
    %118 = vmatpush1.bf16.msra.mxu0 0
    %119 = vmatprep.subr.bf16.mxu0 0
    %120 = vmatpush1.bf16.msra.mxu0 0
    %121 = vmatprep.subr.bf16.mxu0 0
    %122 = vmatpush1.bf16.msra.mxu0 0
    %123 = vmatprep.subr.bf16.mxu0 0
    %124 = vmatpush1.bf16.msra.mxu0 0
    %125 = vmatprep.subr.bf16.mxu0 0
    %126 = vmatpush1.bf16.msra.mxu0 0
    %127 = vmatprep.subr.bf16.mxu0 0
    %128 = vmatpush1.bf16.msra.mxu0 0
    %129 = vmatprep.subr.bf16.mxu0 0
    %130 = vmatpush1.bf16.msra.mxu0 0
    %131 = vmatprep.subr.bf16.mxu0 0
    %132 = vmatpush1.bf16.msra.mxu0 0
    %133 = vmatprep.subr.bf16.mxu0 0
    %134 = vmatpush1.bf16.msra.mxu0 0
    %135 = vmatprep.subr.bf16.mxu0 0
    %136 = vmatpush1.bf16.msra.mxu0 0
    %137 = vmatprep.mubr.bf16.mxu0 0
    %138 = vmatmul.mubr.bf16.gmra.mrb[0].mxu0 %v103
    %v139 = vpop.f32.mrb[0].mxu0
    %v140 = vadd.f32 %v87, %v139
    %v141 = vpop.f32.mrb[0].mxu0
    %v142 = vpop.f32.mrb[0].mxu0
    %v143 = vpop.f32.mrb[0].mxu0
    %144 = vdwg.mxu0
    %v145 = vmax.f32 %v140, 0.0
    %v146 = vld [vmem:[#allocation5] sm:$0xff]
    %vm147 = vcmp.ge.u32.totalorder %v146, 858993459
    %v148 = vmul.f32 %v145, 1.25
    %v149 = vsel %vm147, %v148, 0.0
    %v150 = vpack.c.bf16 %v149, %v149
    %v151 = vld [vmem:[#allocation8] sm:$0xf]
    %v152 = vld [vmem:[#allocation8 + $0x4] sm:$0xf]
    %v153 = vld [vmem:[#allocation8 + $0x8] sm:$0xf]
    %v154 = vld [vmem:[#allocation8 + $0xc] sm:$0xf]
    %v155 = vld [vmem:[#allocation8 + $0x10] sm:$0xf]
    %v156 = vld [vmem:[#allocation8 + $0x14] sm:$0xf]
    %v157 = vld [vmem:[#allocation8 + $0x18] sm:$0xf]
    %v158 = vld [vmem:[#allocation8 + $0x1c] sm:$0xf]
    %v159 = vld [vmem:[%s5] sm:$0x1]
    %v161 = vlaneseq
    %v162 = vshrl.u32 %v161, 7
    %v163 = vsub.s32 0, %v162
    %v164 = vrot.slane %v159, %v163
    %v174 = vunpack.c.l.b16 %v151
    %v175 = vunpack.c.l.b16 %v152
    %v176 = vunpack.c.l.b16 %v153
    %v177 = vunpack.c.l.b16 %v154
    %v178 = vunpack.c.l.b16 %v155
    %v179 = vunpack.c.l.b16 %v156
    %v180 = vunpack.c.l.b16 %v157
    %v181 = vunpack.c.l.b16 %v158
    %v182 = vpack.c.b16 %v175, %v174
    %v183 = vpack.c.b16 %v177, %v176
    %v184 = vpack.c.b16 %v179, %v178
    %v185 = vpack.c.b16 %v181, %v180
    %vm190 = vcmask 523264
    %v192 = vsel %vm190, %v150, 0
    %194 = vmatprep.subr.bf16.mxu0 0
    %195 = vmatpush1.bf16.msra.mxu0 %v182
    %196 = vmatprep.subr.bf16.mxu0 0
    %197 = vmatpush1.bf16.msra.mxu0 %v183
    %198 = vmatprep.subr.bf16.mxu0 0
    %199 = vmatpush1.bf16.msra.mxu0 %v184
    %200 = vmatprep.subr.bf16.mxu0 0
    %201 = vmatpush1.bf16.msra.mxu0 %v185
    %202 = vmatprep.subr.bf16.mxu0 0
    %203 = vmatpush1.bf16.msra.mxu0 0
    %204 = vmatprep.subr.bf16.mxu0 0
    %205 = vmatpush1.bf16.msra.mxu0 0
    %206 = vmatprep.subr.bf16.mxu0 0
    %207 = vmatpush1.bf16.msra.mxu0 0
    %208 = vmatprep.subr.bf16.mxu0 0
    %209 = vmatpush1.bf16.msra.mxu0 0
    %210 = vmatprep.subr.bf16.mxu0 0
    %211 = vmatpush1.bf16.msra.mxu0 0
    %212 = vmatprep.subr.bf16.mxu0 0
    %213 = vmatpush1.bf16.msra.mxu0 0
    %214 = vmatprep.subr.bf16.mxu0 0
    %215 = vmatpush1.bf16.msra.mxu0 0
    %216 = vmatprep.subr.bf16.mxu0 0
    %217 = vmatpush1.bf16.msra.mxu0 0
    %218 = vmatprep.subr.bf16.mxu0 0
    %219 = vmatpush1.bf16.msra.mxu0 0
    %220 = vmatprep.subr.bf16.mxu0 0
    %221 = vmatpush1.bf16.msra.mxu0 0
    %222 = vmatprep.subr.bf16.mxu0 0
    %223 = vmatpush1.bf16.msra.mxu0 0
    %224 = vmatprep.subr.bf16.mxu0 0
    %225 = vmatpush1.bf16.msra.mxu0 0
    %226 = vmatprep.mubr.bf16.mxu0 0
    %227 = vmatmul.mubr.bf16.gmra.mrb[0].mxu0 %v192
    %v228 = vpop.f32.mrb[0].mxu0
    %v229 = vadd.f32 %v164, %v228
    %v230 = vpop.f32.mrb[0].mxu0
    %v231 = vpop.f32.mrb[0].mxu0
    %v232 = vpop.f32.mrb[0].mxu0
    %233 = vdwg.mxu0
    %234 = vst [vmem:[#allocation10] sm:$0xff] %v229
    // Predicated region
    $region42: #{tpu_custom_call.1} parent=1 // pred_check
      _
    $region43: #{tpu_custom_call.1} parent=1 // pred_check_branch
      %236 = sbr.rel (0) target = $region45
    $region44: #{tpu_custom_call.1} parent=1 // pred_region
      %s238 = ssub.s32 128, 128
      %239 = vsyncadd [#allocation4], %s238
      %s241 = sshll.u32 [#allocation10], 4
      %s242 = int_to_ptr.vmem [resolvable:$true] %s241
      %244 = dma.vmem_to_hbm [thread:$0]  %s242, 128, %s6, [#allocation4]
    $region45: #{tpu_custom_call.1} parent=1 // pred_fallthru
      _
    // Predicated region
    $region46: #{tpu_custom_call.1} parent=1 // pred_check
      _
    $region47: #{tpu_custom_call.1} parent=1 // pred_check_branch
      %246 = sbr.rel (0) target = $region49
    $region48: #{tpu_custom_call.1} parent=1 // pred_region
      %247 = dma.done [#allocation4], 128
    $region49: #{tpu_custom_call.1} parent=1 // pred_fallthru
      _
    %248 = vsyncpa [#allocation3], 1
    %249 = vsyncpa [#allocation6], 1
    %250 = vsyncpa [#allocation9], 1
    %251 = vsyncpa [#allocation4], 1

</llo_original>
